<compile_context>
chip_gen: v7x
topology: tpu7x:2x2x1
jax: 0.10.0
libtpu: 0.0.40
codegen_flags: <defaults>
</compile_context>

<pallas_src>
import functools

import jax
import jax.numpy as jnp
from jax.experimental import pallas as pl
from jax.experimental.pallas import tpu as pltpu

_LANES = 128  # pad the 2-wide head output up to one full lane group


def _ima_head_kernel(x_ref, w_ref, b_ref, out_ref):
    """One row tile of the IMA head: (GradReverse == identity fwd) x @ W + b."""
    x = x_ref[...]                                              # (tm, H) f32
    out = jnp.dot(x, w_ref[...], preferred_element_type=jnp.float32)
    out_ref[...] = (out + b_ref[...]).astype(out_ref.dtype)     # (tm, 128)


@functools.partial(jax.jit, static_argnames=("tm",))
def bert_ima_prediction_head(hidden_states, w_adj, b_adj, *, tm=512):
    """Forward pass of BertIMAPredictionHead.

    hidden_states: (B, S, H) float32
    w_adj:         (2, H)    float32  (PyTorch nn.Linear layout: (out, in))
    b_adj:         (2,)      float32
    Returns logits of shape (B, S, 2).
    """
    # TODO(synk): gradient reversal (backward: -alpha * grad) has no effect on
    # the forward pass; for training, wrap this call in jax.custom_vjp.
    B, S, H = hidden_states.shape
    n_out = w_adj.shape[0]
    M = B * S

    # Adaptive row tile: multiple of 8 sublanes, no bigger than the (rounded)
    # row count so small inputs don't burn a mostly-padded 512-row tile.
    m_rounded = max(8, ((M + 7) // 8) * 8)
    tm_eff = min(tm, m_rounded)
    tm_eff = max(8, (tm_eff // 8) * 8)

    # Pad rows so the row tile divides the total row count for any (B, S).
    m_pad = pl.cdiv(M, tm_eff) * tm_eff
    x2d = hidden_states.reshape(M, H).astype(jnp.float32)
    if m_pad != M:
        x2d = jnp.pad(x2d, ((0, m_pad - M), (0, 0)))

    # Lane-pad the 2-wide head to 128 output lanes -> dense stores in-kernel.
    w_p = jnp.zeros((H, _LANES), jnp.float32).at[:, :n_out].set(w_adj.T)
    b_p = jnp.zeros((1, _LANES), jnp.float32).at[0, :n_out].set(b_adj)

    out_p = pl.pallas_call(
        _ima_head_kernel,
        out_shape=jax.ShapeDtypeStruct((m_pad, _LANES), jnp.float32),
        grid_spec=pltpu.PrefetchScalarGridSpec(
            num_scalar_prefetch=0,
            grid=(m_pad // tm_eff,),
            in_specs=[
                pl.BlockSpec((tm_eff, H), lambda i: (i, 0)),     # activations (streamed)
                pl.BlockSpec((H, _LANES), lambda i: (0, 0)),     # padded weight (resident)
                pl.BlockSpec((1, _LANES), lambda i: (0, 0)),     # padded bias (resident)
            ],
            out_specs=pl.BlockSpec((tm_eff, _LANES), lambda i: (i, 0)),
        ),
        compiler_params=pltpu.CompilerParams(
            dimension_semantics=("parallel",),
            vmem_limit_bytes=64 * 1024 * 1024,
        ),
    )(x2d, w_p, b_p)

    return out_p[:M, :n_out].reshape(B, S, n_out)


def _reference(hidden_states, w_adj, b_adj):
    """Pure-JAX reference (grad reverse is identity in forward)."""
    return hidden_states @ w_adj.T + b_adj


if __name__ == "__main__":
    B, S, H = 2, 8, 128   # small BERT-like shapes; M = 16 rows

    key = jax.random.PRNGKey(0)
    k_x, k_w, k_b = jax.random.split(key, 3)
    hidden_states = jax.random.normal(k_x, (B, S, H), jnp.float32)
    w_adj = 0.02 * jax.random.normal(k_w, (2, H), jnp.float32)
    b_adj = 0.01 * jax.random.normal(k_b, (2,), jnp.float32)

    logits = bert_ima_prediction_head(hidden_states, w_adj, b_adj)
    jax.block_until_ready(logits)

    ref = _reference(hidden_states, w_adj, b_adj)
    assert logits.shape == (B, S, 2)
    assert jnp.allclose(logits, ref, atol=1e-4, rtol=1e-4)

    print("KERNEL_OK")
</pallas_src>

<mosaic_0001>
module attributes {stable_mosaic.version = 11 : i64} {
  func.func @_ima_head_kernel(%arg0: i32, %arg1: memref<16x128xf32, #tpu.memory_space<vmem>>, %arg2: memref<128x128xf32, #tpu.memory_space<vmem>>, %arg3: memref<1x128xf32, #tpu.memory_space<vmem>>, %arg4: memref<16x128xf32, #tpu.memory_space<vmem>>) attributes {dimension_semantics = [#tpu.dimension_semantics<parallel>], iteration_bounds = array<i64: 1>, scalar_prefetch = 0 : i64, scratch_operands = 0 : i64, tpu.core_type = #tpu.core_type<tc>, window_params = [{transform_indices = @transform_0, window_bounds = array<i64: 16, 128>}, {pipeline_mode = #tpu.pipeline_mode<synchronous>, transform_indices = @transform_1, window_bounds = array<i64: 128, 128>}, {pipeline_mode = #tpu.pipeline_mode<synchronous>, transform_indices = @transform_2, window_bounds = array<i64: 1, 128>}, {transform_indices = @transform_3, window_bounds = array<i64: 16, 128>}]} {
    %c0 = arith.constant 0 : index
    %c0_0 = arith.constant 0 : index
    %0 = vector.load %arg1[%c0, %c0_0] : memref<16x128xf32, #tpu.memory_space<vmem>>, vector<16x128xf32>
    %c0_1 = arith.constant 0 : index
    %c0_2 = arith.constant 0 : index
    %1 = vector.load %arg2[%c0_1, %c0_2] : memref<128x128xf32, #tpu.memory_space<vmem>>, vector<128x128xf32>
    %cst = arith.constant dense<0.000000e+00> : vector<16x128xf32>
    %2 = tpu.matmul %0, %1, %cst {dimension_numbers = #tpu.dot_dimension_numbers<[1], [0], [0], [1], [0, 0, 1, 1], [], []>} : vector<16x128xf32>, vector<128x128xf32>, vector<16x128xf32> -> vector<16x128xf32>
    %c0_3 = arith.constant 0 : index
    %c0_4 = arith.constant 0 : index
    %3 = vector.load %arg3[%c0_3, %c0_4] : memref<1x128xf32, #tpu.memory_space<vmem>>, vector<1x128xf32>
    %4 = vector.broadcast %3 : vector<1x128xf32> to vector<16x128xf32>
    %5 = arith.addf %2, %4 : vector<16x128xf32>
    %c0_5 = arith.constant 0 : index
    %c0_6 = arith.constant 0 : index
    %6 = vector.load %arg4[%c0_5, %c0_6] : memref<16x128xf32, #tpu.memory_space<vmem>>, vector<16x128xf32>
    tpu.vector_store %arg4[%c0_5, %c0_6], %5 {strides = array<i32>} : memref<16x128xf32, #tpu.memory_space<vmem>>, vector<16x128xf32>,
    return
  }
  func.func @transform_0(%arg0: i32) -> (i32, i32) {
    %c0_i32 = arith.constant 0 : i32
    %c0_i32_0 = arith.constant 0 : i32
    return %arg0, %c0_i32 : i32, i32
  }
  func.func @transform_1(%arg0: i32) -> (i32, i32) {
    %c0_i32 = arith.constant 0 : i32
    %c0_i32_0 = arith.constant 0 : i32
    %c0_i32_1 = arith.constant 0 : i32
    return %c0_i32, %c0_i32_0 : i32, i32
  }
  func.func @transform_2(%arg0: i32) -> (i32, i32) {
    %c0_i32 = arith.constant 0 : i32
    %c0_i32_0 = arith.constant 0 : i32
    %c0_i32_1 = arith.constant 0 : i32
    return %c0_i32, %c0_i32_0 : i32, i32
  }
  func.func @transform_3(%arg0: i32) -> (i32, i32) {
    %c0_i32 = arith.constant 0 : i32
    %c0_i32_0 = arith.constant 0 : i32
    return %arg0, %c0_i32 : i32, i32
  }
}

</mosaic_0001>

<llo_original>
// kernel: bert_ima_prediction_head.1
$region0: #{bert_ima_prediction_head.1}
  #allocation0 [shape = 'u32[]', space=smem, size = 0x4, offset = 0x4, fixed_abs, tag = 'smem constant byte address 0x4 - core index']
  #allocation1 [shape = 'u32[144,128]{1,0:T(1,128)}', space=vmem, size = 0x12000, scoped, tag = 'internal scratch']
  %s0 = inlined_call_operand.hbm [shape: f32[16,128], index: 0, kind: input, shape index: {}]
  %s1 = inlined_call_operand.hbm [shape: f32[128,128], index: 1, kind: input, shape index: {}]
  %s2 = inlined_call_operand.hbm [shape: f32[1,128], index: 2, kind: input, shape index: {}]
  %s3 = inlined_call_operand.hbm [shape: f32[16,128], index: 3, kind: output, shape index: {}]
  %s4 = sld [smem:[#allocation0]]
  $region34: #{bert_ima_prediction_head.1} parent=0
    _
  %s6 = ssub.s32 1, %s4
  %s7 = scalar_select 0, %s6, %s4
  $region1: #{bert_ima_prediction_head.1} parent=0
    #allocation2 [shape = 'u8[8192]{0}', space=vmem, size = 0x2000, scoped, tag = 'input window, operand 0, single buffered']
    #allocation3 [shape = 's32[1]{0}', space=sflag, size = 0x4, scoped, tag = 'scoped memory for bert_ima_prediction_head.1']
    #allocation4 [shape = 's32[1]{0}', space=sflag, size = 0x4, scoped, tag = 'scoped memory for bert_ima_prediction_head.1']
    #allocation5 [shape = 'u8[65536]{0}', space=vmem, size = 0x10000, scoped, tag = 'input window, operand 1, single buffered']
    #allocation6 [shape = 's32[1]{0}', space=sflag, size = 0x4, scoped, tag = 'scoped memory for bert_ima_prediction_head.1']
    #allocation7 [shape = 'u8[512]{0}', space=vmem, size = 0x400, scoped, tag = 'input window, operand 2, single buffered']
    #allocation8 [shape = 'u8[8192]{0}', space=vmem, size = 0x2000, scoped, tag = 'output window, operand 0, single buffered']
    %8 = vsyncpa [#allocation3], 0
    %9 = vsyncpa [#allocation6], 0
    %10 = vsyncpa [#allocation4], 0
    // Predicated region
    $region2: #{bert_ima_prediction_head.1} parent=1 // pred_check
      _
    $region3: #{bert_ima_prediction_head.1} parent=1 // pred_check_branch
      %12 = sbr.rel (0) target = $region5
    $region4: #{bert_ima_prediction_head.1} parent=1 // pred_region
      %s14 = ssub.s32 256, 256
      %15 = vsyncadd [#allocation3], %s14
      %s16 = sshll.u32 [#allocation2], 4
      %s17 = int_to_ptr.vmem [resolvable:$true] %s16
      %22 = dma.hbm_to_vmem [thread:$0]  %s0, 256, %s17, [#allocation3], 128, 128, 8
    $region5: #{bert_ima_prediction_head.1} parent=1 // pred_fallthru
      _
    // Predicated region
    $region6: #{bert_ima_prediction_head.1} parent=1 // pred_check
      _
    $region7: #{bert_ima_prediction_head.1} parent=1 // pred_check_branch
      %24 = sbr.rel (0) target = $region9
    $region8: #{bert_ima_prediction_head.1} parent=1 // pred_region
      %s26 = ssub.s32 2048, 2048
      %27 = vsyncadd [#allocation6], %s26
      %s28 = sshll.u32 [#allocation5], 4
      %s29 = int_to_ptr.vmem [resolvable:$true] %s28
      %34 = dma.hbm_to_vmem [thread:$0]  %s1, 2048, %s29, [#allocation6], 128, 128, 8
    $region9: #{bert_ima_prediction_head.1} parent=1 // pred_fallthru
      _
    // Predicated region
    $region10: #{bert_ima_prediction_head.1} parent=1 // pred_check
      _
    $region11: #{bert_ima_prediction_head.1} parent=1 // pred_check_branch
      %36 = sbr.rel (0) target = $region13
    $region12: #{bert_ima_prediction_head.1} parent=1 // pred_region
      %s38 = ssub.s32 16, 16
      %39 = vsyncadd [#allocation6], %s38
      %s41 = sshll.u32 [#allocation7], 4
      %s42 = int_to_ptr.vmem [resolvable:$true] %s41
      %44 = dma.hbm_to_vmem [thread:$0]  %s2, 16, %s42, [#allocation6]
    $region13: #{bert_ima_prediction_head.1} parent=1 // pred_fallthru
      _
    // Predicated region
    $region14: #{bert_ima_prediction_head.1} parent=1 // pred_check
      _
    $region15: #{bert_ima_prediction_head.1} parent=1 // pred_check_branch
      %46 = sbr.rel (0) target = $region17
    $region16: #{bert_ima_prediction_head.1} parent=1 // pred_region
      %47 = dma.done [#allocation3], 256
    $region17: #{bert_ima_prediction_head.1} parent=1 // pred_fallthru
      _
    // Predicated region
    $region18: #{bert_ima_prediction_head.1} parent=1 // pred_check
      _
    $region19: #{bert_ima_prediction_head.1} parent=1 // pred_check_branch
      %49 = sbr.rel (0) target = $region21
    $region20: #{bert_ima_prediction_head.1} parent=1 // pred_region
      %50 = dma.done [#allocation6], 2048
    $region21: #{bert_ima_prediction_head.1} parent=1 // pred_fallthru
      _
    // Predicated region
    $region22: #{bert_ima_prediction_head.1} parent=1 // pred_check
      _
    $region23: #{bert_ima_prediction_head.1} parent=1 // pred_check_branch
      %52 = sbr.rel (0) target = $region25
    $region24: #{bert_ima_prediction_head.1} parent=1 // pred_region
      %53 = dma.done [#allocation6], 16
    $region25: #{bert_ima_prediction_head.1} parent=1 // pred_fallthru
      _
    %v54 = vld [vmem:[#allocation2] sm:$0xff]
    %v55 = vld [vmem:[#allocation2 + $0x8] sm:$0xff]
    %v56 = vld [vmem:[#allocation5] sm:$0xff]
    %v57 = vld [vmem:[#allocation5 + $0x8] sm:$0xff]
    %v58 = vld [vmem:[#allocation5 + $0x10] sm:$0xff]
    %v59 = vld [vmem:[#allocation5 + $0x18] sm:$0xff]
    %v60 = vld [vmem:[#allocation5 + $0x20] sm:$0xff]
    %v61 = vld [vmem:[#allocation5 + $0x28] sm:$0xff]
    %v62 = vld [vmem:[#allocation5 + $0x30] sm:$0xff]
    %v63 = vld [vmem:[#allocation5 + $0x38] sm:$0xff]
    %v64 = vld [vmem:[#allocation5 + $0x40] sm:$0xff]
    %v65 = vld [vmem:[#allocation5 + $0x48] sm:$0xff]
    %v66 = vld [vmem:[#allocation5 + $0x50] sm:$0xff]
    %v67 = vld [vmem:[#allocation5 + $0x58] sm:$0xff]
    %v68 = vld [vmem:[#allocation5 + $0x60] sm:$0xff]
    %v69 = vld [vmem:[#allocation5 + $0x68] sm:$0xff]
    %v70 = vld [vmem:[#allocation5 + $0x70] sm:$0xff]
    %v71 = vld [vmem:[#allocation5 + $0x78] sm:$0xff]
    %v72 = vld [vmem:[#allocation7] sm:$0x1]
    %v74 = vlaneseq
    %v75 = vshrl.u32 %v74, 7
    %v76 = vsub.s32 0, %v75
    %v77 = vrot.slane %v72, %v76
    %79 = vmatprep.subr.mxu0 0.0
    %80 = vmatpush1.msra.mxu0 %v56
    %81 = vmatprep.subr.mxu0 0.0
    %82 = vmatpush1.msra.mxu0 %v57
    %83 = vmatprep.subr.mxu0 0.0
    %84 = vmatpush1.msra.mxu0 %v58
    %85 = vmatprep.subr.mxu0 0.0
    %86 = vmatpush1.msra.mxu0 %v59
    %87 = vmatprep.subr.mxu0 0.0
    %88 = vmatpush1.msra.mxu0 %v60
    %89 = vmatprep.subr.mxu0 0.0
    %90 = vmatpush1.msra.mxu0 %v61
    %91 = vmatprep.subr.mxu0 0.0
    %92 = vmatpush1.msra.mxu0 %v62
    %93 = vmatprep.subr.mxu0 0.0
    %94 = vmatpush1.msra.mxu0 %v63
    %95 = vmatprep.subr.mxu0 0.0
    %96 = vmatpush1.msra.mxu0 %v64
    %97 = vmatprep.subr.mxu0 0.0
    %98 = vmatpush1.msra.mxu0 %v65
    %99 = vmatprep.subr.mxu0 0.0
    %100 = vmatpush1.msra.mxu0 %v66
    %101 = vmatprep.subr.mxu0 0.0
    %102 = vmatpush1.msra.mxu0 %v67
    %103 = vmatprep.subr.mxu0 0.0
    %104 = vmatpush1.msra.mxu0 %v68
    %105 = vmatprep.subr.mxu0 0.0
    %106 = vmatpush1.msra.mxu0 %v69
    %107 = vmatprep.subr.mxu0 0.0
    %108 = vmatpush1.msra.mxu0 %v70
    %109 = vmatprep.subr.mxu0 0.0
    %110 = vmatpush1.msra.mxu0 %v71
    %111 = vmatprep.subr.mxu0 0.0
    %112 = vmatpush1.msra.mxu0 0.0
    %113 = vmatprep.subr.mxu0 0.0
    %114 = vmatpush1.msra.mxu0 0.0
    %115 = vmatprep.subr.mxu0 0.0
    %116 = vmatpush1.msra.mxu0 0.0
    %117 = vmatprep.subr.mxu0 0.0
    %118 = vmatpush1.msra.mxu0 0.0
    %119 = vmatprep.subr.mxu0 0.0
    %120 = vmatpush1.msra.mxu0 0.0
    %121 = vmatprep.subr.mxu0 0.0
    %122 = vmatpush1.msra.mxu0 0.0
    %123 = vmatprep.subr.mxu0 0.0
    %124 = vmatpush1.msra.mxu0 0.0
    %125 = vmatprep.subr.mxu0 0.0
    %126 = vmatpush1.msra.mxu0 0.0
    %127 = vmatprep.subr.mxu0 0.0
    %128 = vmatpush1.msra.mxu0 0.0
    %129 = vmatprep.subr.mxu0 0.0
    %130 = vmatpush1.msra.mxu0 0.0
    %131 = vmatprep.subr.mxu0 0.0
    %132 = vmatpush1.msra.mxu0 0.0
    %133 = vmatprep.subr.mxu0 0.0
    %134 = vmatpush1.msra.mxu0 0.0
    %135 = vmatprep.subr.mxu0 0.0
    %136 = vmatpush1.msra.mxu0 0.0
    %137 = vmatprep.subr.mxu0 0.0
    %138 = vmatpush1.msra.mxu0 0.0
    %139 = vmatprep.subr.mxu0 0.0
    %140 = vmatpush1.msra.mxu0 0.0
    %141 = vmatprep.subr.mxu0 0.0
    %142 = vmatpush1.msra.mxu0 0.0
    %143 = vmatprep.mubr.f32.mxu0 0.0
    %144 = vmatmul.mubr.f32.gmra.mrb[0].mxu0 %v54
    %v145 = vpop.f32.mrb[0].mxu0
    %v146 = vadd.f32 %v77, %v145
    %v147 = vpop.f32.mrb[0].mxu0
    %148 = vmatprep.mubr.f32.mxu0 0.0
    %149 = vmatmul.mubr.f32.gmra.mrb[0].mxu0 %v55
    %v150 = vpop.f32.mrb[0].mxu0
    %v151 = vadd.f32 %v77, %v150
    %v152 = vpop.f32.mrb[0].mxu0
    %153 = vdwg.mxu0
    %154 = vst [vmem:[#allocation8] sm:$0xff] %v146
    %155 = vst [vmem:[#allocation8 + $0x8] sm:$0xff] %v151
    // Predicated region
    $region26: #{bert_ima_prediction_head.1} parent=1 // pred_check
      _
    $region27: #{bert_ima_prediction_head.1} parent=1 // pred_check_branch
      %157 = sbr.rel (0) target = $region29
    $region28: #{bert_ima_prediction_head.1} parent=1 // pred_region
      %s159 = ssub.s32 256, 256
      %160 = vsyncadd [#allocation4], %s159
      %s161 = sshll.u32 [#allocation8], 4
      %s162 = int_to_ptr.vmem [resolvable:$true] %s161
      %167 = dma.vmem_to_hbm [thread:$0]  %s162, 256, %s3, [#allocation4], 128, 128, 8
    $region29: #{bert_ima_prediction_head.1} parent=1 // pred_fallthru
      _
    // Predicated region
    $region30: #{bert_ima_prediction_head.1} parent=1 // pred_check
      _
    $region31: #{bert_ima_prediction_head.1} parent=1 // pred_check_branch
      %169 = sbr.rel (0) target = $region33
    $region32: #{bert_ima_prediction_head.1} parent=1 // pred_region
      %170 = dma.done [#allocation4], 256
    $region33: #{bert_ima_prediction_head.1} parent=1 // pred_fallthru
      _
    %171 = vsyncpa [#allocation3], 1
    %172 = vsyncpa [#allocation6], 1
    %173 = vsyncpa [#allocation4], 1

</llo_original>
